<compile_context>
chip_gen: v5e
topology: v5e:2x2
jax: 0.10.0
libtpu: 0.0.40
codegen_flags: <defaults>
</compile_context>

<pallas_src>
import functools

import jax
import jax.numpy as jnp
from jax import lax
from jax.experimental import pallas as pl
from jax.experimental.pallas import tpu as pltpu


def _conv_norm_act_kernel(xpad_ref, w_ref, p_ref, out_ref, rhs_ref, *,
                          k_size, c_in_p, l_out, bb, eps):
    """Fused Conv1d('same') + GroupNorm(1) + PReLU for one block of bb samples.

    xpad_ref: (bb, C_in_p, L + 2*pad)   channel/length zero-padded input block
    w_ref   : (C_out, K*C_in_p + 1)     (k,c)-major weight + bias column, compute dtype
    p_ref   : (C_out, 3)                packed [gamma, beta, alpha], f32
    out_ref : (C_out, bb*L)             lane-dense output slab (sample-major columns)
    rhs_ref : (K*C_in_p + 1, bb*L)      im2col RHS scratch, compute dtype
    """
    c_out = out_ref.shape[0]
    bbl = bb * l_out
    ones_row = k_size * c_in_p

    # Bias fold: constant ones-row in the RHS x bias column in the weight.
    # Re-written every grid step (one row, trivial) so it is valid on every core
    # under megacore ("parallel") grid sharding (no program_id==0 init hazard).
    rhs_ref[ones_row:ones_row + 1, :] = jnp.ones((1, bbl), dtype=rhs_ref.dtype)

    # im2col with the batch folded into the lane dim:
    #   rhs[k*C_in_p + c, b*L + t] = xpad[b, c, t + k]
    # TODO(synk): at production L, tile L with a (K-1) halo and use lax.fori_loop
    # here so live ranges stay bounded.
    for b in range(bb):
        xb = xpad_ref[b]                                     # (C_in_p, Lp)
        for k in range(k_size):
            rhs_ref[k * c_in_p:(k + 1) * c_in_p, b * l_out:(b + 1) * l_out] = (
                xb[:, k:k + l_out].astype(rhs_ref.dtype))

    # Conv1d (stride=1, groups=1) + bias as ONE MXU matmul, f32 accumulation.
    acc = jnp.dot(w_ref[...], rhs_ref[...], preferred_element_type=jnp.float32)

    # ---- GroupNorm(num_groups=1), per sample, vectorized over the whole slab ----
    # Single-pass sums (sum & sum of squares); variance clamped at 0.
    # NOTE: E[x^2]-E[x]^2 can cancel when |mean| >> std; acceptable here, use a
    # two-pass variance if that regime matters.
    colsum = jnp.sum(acc, axis=0, keepdims=True)             # (1, bb*L)  sublane reduce
    colsq = jnp.sum(acc * acc, axis=0, keepdims=True)        # (1, bb*L)

    # 0/1 sample-selection matrices built from iota (no integer division):
    #   red[j, s]  = 1 iff column j belongs to sample s      (bb*L, bb)
    #   expd[s, j] = 1 iff column j belongs to sample s      (bb, bb*L)
    j_r = lax.broadcasted_iota(jnp.int32, (bbl, bb), 0)
    s_r = lax.broadcasted_iota(jnp.int32, (bbl, bb), 1)
    d_r = j_r - s_r * l_out
    red = jnp.where((d_r >= 0) & (d_r < l_out), 1.0, 0.0).astype(jnp.float32)
    j_e = lax.broadcasted_iota(jnp.int32, (bb, bbl), 1)
    s_e = lax.broadcasted_iota(jnp.int32, (bb, bbl), 0)
    d_e = j_e - s_e * l_out
    expd = jnp.where((d_e >= 0) & (d_e < l_out), 1.0, 0.0).astype(jnp.float32)

    inv_n = 1.0 / float(c_out * l_out)
    mean = jnp.dot(colsum, red, preferred_element_type=jnp.float32) * inv_n   # (1, bb)
    ex2 = jnp.dot(colsq, red, preferred_element_type=jnp.float32) * inv_n     # (1, bb)
    var = jnp.maximum(ex2 - mean * mean, 0.0)
    inv_std = lax.rsqrt(var + eps)                                            # EUP slot

    p = p_ref[...]                                           # (C_out, 3) f32
    gamma = p[:, 0:1]
    beta = p[:, 1:2]
    alpha = p[:, 2:3]

    # Fused norm affine: per-(channel, sample) scale/shift, expanded back to the
    # full lane width with tiny MXU matmuls (keeps the epilogue at ~2 VALU passes).
    scale = gamma * inv_std                                  # (C_out, bb)
    shift = beta - mean * scale                              # (C_out, bb)
    scale_full = jnp.dot(scale, expd, preferred_element_type=jnp.float32)   # (C_out, bb*L)
    shift_full = jnp.dot(shift, expd, preferred_element_type=jnp.float32)

    y = acc * scale_full + shift_full
    # PReLU with per-channel slope; single lane-dense store of the whole slab.
    out_ref[...] = jnp.where(y >= 0.0, y, alpha * y).astype(out_ref.dtype)


def _vmem_limit_bytes():
    # v5e/v6e: 128 MiB physical VMEM -> allow bigger tiles (review item).
    # v7x / unknown: stay conservative under the 64 MiB physical budget.
    try:
        kind = jax.devices()[0].device_kind.lower()
    except Exception:
        return 48 * 1024 * 1024
    if "v5" in kind or "v6" in kind:
        return 96 * 1024 * 1024
    return 48 * 1024 * 1024


def _pick_batch_block(n, l_out, cap):
    """Largest divisor of n, <= cap, keeping the lane-dense out block legal:
    bb*l_out must be a multiple of 128 unless the block covers the full array."""
    for d in range(min(cap, n), 0, -1):
        if n % d == 0 and (d * l_out) % 128 == 0:
            return d
    return n   # single grid step: block == full array (always a legal block shape)


def conv_norm_act(x, w, b, gamma, beta, alpha, *, stride=1, groups=1, eps=1e-8,
                  batch_block=8, compute_dtype=jnp.float32):
    """ConvNormAct forward.  x: (N, C_in, L) f32 -> (N, C_out, L) f32."""
    assert stride == 1, "stride != 1 not needed for this module's defaults"
    assert groups == 1, "groups != 1 not needed for this module's defaults"
    n, c_in, l = x.shape
    c_out, c_in_w, k_size = w.shape
    assert c_in_w == c_in
    assert k_size % 2 == 1, "only 'same' conv (odd kSize, stride 1) supported"
    pad = (k_size - 1) // 2
    l_out = l
    lp = l + 2 * pad

    # Pad C_in to a sublane multiple (8) so every im2col row-block write is
    # sublane-aligned (extra channels are zeros; matching weight columns are zero).
    c_in_p = ((c_in + 7) // 8) * 8

    # TODO(synk): at production L, do the (K-1) halo in-kernel instead of this
    # wrapper-side pad (extra HBM round trip of the activation).
    xpad = jnp.pad(x, ((0, 0), (0, c_in_p - c_in), (pad, pad)))

    # Host-side weight relayout + bias fold + cast: (C_out, K*C_in_p + 1),
    # contraction dim (k, c)-major; last column is the conv bias (pairs with the
    # constant ones-row the kernel writes into the im2col RHS).
    w_t = jnp.pad(jnp.transpose(w, (0, 2, 1)), ((0, 0), (0, 0), (0, c_in_p - c_in)))
    w2 = jnp.concatenate([w_t.reshape(c_out, k_size * c_in_p), b[:, None]], axis=1)
    w2 = w2.astype(compute_dtype)

    params = jnp.stack([gamma, beta, alpha], axis=1).astype(jnp.float32)  # (C_out, 3)

    # Batch block: fuse several samples per grid step (amortize ~0.35us/step and
    # make the output lane-dense) while keeping grid length >= 2 when possible so
    # v7x's two TensorCores both get work.
    cap = min(batch_block, max(1, n // 2))
    bb = _pick_batch_block(n, l_out, cap)
    kc = k_size * c_in_p + 1

    kernel = functools.partial(_conv_norm_act_kernel, k_size=k_size, c_in_p=c_in_p,
                               l_out=l_out, bb=bb, eps=eps)

    out = pl.pallas_call(
        kernel,
        out_shape=jax.ShapeDtypeStruct((c_out, n * l_out), x.dtype),
        grid_spec=pltpu.PrefetchScalarGridSpec(
            num_scalar_prefetch=0,
            grid=(n // bb,),
            in_specs=[
                pl.BlockSpec((bb, c_in_p, lp), lambda i: (i, 0, 0)),    # padded input
                pl.BlockSpec((c_out, kc), lambda i: (0, 0)),            # weight + bias col
                pl.BlockSpec((c_out, 3), lambda i: (0, 0)),             # gamma/beta/alpha
            ],
            out_specs=pl.BlockSpec((c_out, bb * l_out), lambda i: (0, i)),
            scratch_shapes=[pltpu.VMEM((kc, bb * l_out), compute_dtype)],
        ),
        compiler_params=pltpu.CompilerParams(
            dimension_semantics=("parallel",),
            vmem_limit_bytes=_vmem_limit_bytes()),
    )(xpad, w2, params)

    # Lane-dense (C_out, N*L) slab -> (N, C_out, L).
    return jnp.transpose(out.reshape(c_out, n, l_out), (1, 0, 2))


def _reference(x, w, b, gamma, beta, alpha, eps=1e-8):
    """Pure-JAX reference mirroring the PyTorch ConvNormAct semantics."""
    k = w.shape[-1]
    pad = (k - 1) // 2
    y = lax.conv_general_dilated(
        x, w, window_strides=(1,), padding=[(pad, pad)],
        dimension_numbers=("NCH", "OIH", "NCH"))
    y = y + b[None, :, None]
    mean = jnp.mean(y, axis=(1, 2), keepdims=True)
    var = jnp.mean((y - mean) ** 2, axis=(1, 2), keepdims=True)
    yn = (y - mean) / jnp.sqrt(var + eps)
    yn = yn * gamma[None, :, None] + beta[None, :, None]
    return jnp.where(yn >= 0, yn, alpha[None, :, None] * yn)


if __name__ == "__main__":
    # ConvNormAct(nIn=4, nOut=8, kSize=3) at small shapes; bb=2 samples fused into
    # the lane dim (out block (8, 128)), grid=(2,).
    N, C_IN, C_OUT, K, L = 4, 4, 8, 3, 64

    key = jax.random.PRNGKey(0)
    kx, kw, kb, kg, kbe = jax.random.split(key, 5)
    x = jax.random.normal(kx, (N, C_IN, L), dtype=jnp.float32)
    w = 0.1 * jax.random.normal(kw, (C_OUT, C_IN, K), dtype=jnp.float32)
    b = 0.1 * jax.random.normal(kb, (C_OUT,), dtype=jnp.float32)
    gamma = 1.0 + 0.1 * jax.random.normal(kg, (C_OUT,), dtype=jnp.float32)
    beta = 0.1 * jax.random.normal(kbe, (C_OUT,), dtype=jnp.float32)
    alpha = 0.25 * jnp.ones((C_OUT,), dtype=jnp.float32)   # PReLU default init

    ref = _reference(x, w, b, gamma, beta, alpha)
    out = jax.block_until_ready(conv_norm_act(x, w, b, gamma, beta, alpha))
    assert out.shape == ref.shape
    assert jnp.allclose(out, ref, atol=1e-4, rtol=1e-4), float(
        jnp.max(jnp.abs(out - ref)))

    # 1x1-conv configuration (mirrors the model's proj_1x1 usage), f32 + bf16 paths.
    N2, C_IN2, C_OUT2, K2, L2 = 4, 8, 16, 1, 128
    kx2, kw2, kb2, kg2, kbe2 = jax.random.split(jax.random.PRNGKey(1), 5)
    x2 = jax.random.normal(kx2, (N2, C_IN2, L2), dtype=jnp.float32)
    w2_ = 0.1 * jax.random.normal(kw2, (C_OUT2, C_IN2, K2), dtype=jnp.float32)
    b2 = 0.1 * jax.random.normal(kb2, (C_OUT2,), dtype=jnp.float32)
    g2 = 1.0 + 0.1 * jax.random.normal(kg2, (C_OUT2,), dtype=jnp.float32)
    be2 = 0.1 * jax.random.normal(kbe2, (C_OUT2,), dtype=jnp.float32)
    a2 = 0.25 * jnp.ones((C_OUT2,), dtype=jnp.float32)

    ref2 = _reference(x2, w2_, b2, g2, be2, a2)
    out2 = jax.block_until_ready(conv_norm_act(x2, w2_, b2, g2, be2, a2))
    assert jnp.allclose(out2, ref2, atol=1e-4, rtol=1e-4), float(
        jnp.max(jnp.abs(out2 - ref2)))

    out2_bf16 = jax.block_until_ready(
        conv_norm_act(x2, w2_, b2, g2, be2, a2, compute_dtype=jnp.bfloat16))
    assert jnp.allclose(out2_bf16, ref2, atol=5e-2, rtol=5e-2), float(
        jnp.max(jnp.abs(out2_bf16 - ref2)))

    print("KERNEL_OK")
</pallas_src>

<mosaic_0001>
module attributes {stable_mosaic.version = 11 : i64} {
  func.func @_conv_norm_act_kernel(%arg0: i32, %arg1: memref<2x8x66xf32, #tpu.memory_space<vmem>>, %arg2: memref<8x25xf32, #tpu.memory_space<vmem>>, %arg3: memref<8x3xf32, #tpu.memory_space<vmem>>, %arg4: memref<8x128xf32, #tpu.memory_space<vmem>>, %arg5: memref<25x128xf32, #tpu.memory_space<vmem>>) attributes {dimension_semantics = [#tpu.dimension_semantics<parallel>], iteration_bounds = array<i64: 2>, scalar_prefetch = 0 : i64, scratch_operands = 1 : i64, tpu.core_type = #tpu.core_type<tc>, window_params = [{transform_indices = @transform_0, window_bounds = array<i64: 2, 8, 66>}, {pipeline_mode = #tpu.pipeline_mode<synchronous>, transform_indices = @transform_1, window_bounds = array<i64: 8, 25>}, {pipeline_mode = #tpu.pipeline_mode<synchronous>, transform_indices = @transform_2, window_bounds = array<i64: 8, 3>}, {transform_indices = @transform_3, window_bounds = array<i64: 8, 128>}]} {
    %cst = arith.constant 1.000000e+00 : f32
    %0 = vector.broadcast %cst : f32 to vector<1x128xf32>
    %c24 = arith.constant 24 : index
    %c0 = arith.constant 0 : index
    %1 = vector.load %arg5[%c24, %c0] : memref<25x128xf32, #tpu.memory_space<vmem>>, vector<1x128xf32>
    tpu.vector_store %arg5[%c24, %c0], %0 {strides = array<i32>} : memref<25x128xf32, #tpu.memory_space<vmem>>, vector<1x128xf32>,
    %c0_0 = arith.constant 0 : index
    %c0_1 = arith.constant 0 : index
    %c0_2 = arith.constant 0 : index
    %2 = vector.load %arg1[%c0_0, %c0_1, %c0_2] : memref<2x8x66xf32, #tpu.memory_space<vmem>>, vector<1x8x66xf32>
    %3 = vector.shape_cast %2 : vector<1x8x66xf32> to vector<8x66xf32>
    %4 = vector.extract_strided_slice %3 {offsets = [0, 0], sizes = [8, 64], strides = [1, 1]} : vector<8x66xf32> to vector<8x64xf32>
    %c0_3 = arith.constant 0 : index
    %c0_4 = arith.constant 0 : index
    %5 = vector.load %arg5[%c0_3, %c0_4] : memref<25x128xf32, #tpu.memory_space<vmem>>, vector<8x64xf32>
    tpu.vector_store %arg5[%c0_3, %c0_4], %4 {strides = array<i32>} : memref<25x128xf32, #tpu.memory_space<vmem>>, vector<8x64xf32>,
    %6 = vector.extract_strided_slice %3 {offsets = [0, 1], sizes = [8, 64], strides = [1, 1]} : vector<8x66xf32> to vector<8x64xf32>
    %c8 = arith.constant 8 : index
    %c0_5 = arith.constant 0 : index
    %7 = vector.load %arg5[%c8, %c0_5] : memref<25x128xf32, #tpu.memory_space<vmem>>, vector<8x64xf32>
    tpu.vector_store %arg5[%c8, %c0_5], %6 {strides = array<i32>} : memref<25x128xf32, #tpu.memory_space<vmem>>, vector<8x64xf32>,
    %8 = vector.extract_strided_slice %3 {offsets = [0, 2], sizes = [8, 64], strides = [1, 1]} : vector<8x66xf32> to vector<8x64xf32>
    %c16 = arith.constant 16 : index
    %c0_6 = arith.constant 0 : index
    %9 = vector.load %arg5[%c16, %c0_6] : memref<25x128xf32, #tpu.memory_space<vmem>>, vector<8x64xf32>
    tpu.vector_store %arg5[%c16, %c0_6], %8 {strides = array<i32>} : memref<25x128xf32, #tpu.memory_space<vmem>>, vector<8x64xf32>,
    %c1 = arith.constant 1 : index
    %c0_7 = arith.constant 0 : index
    %c0_8 = arith.constant 0 : index
    %10 = vector.load %arg1[%c1, %c0_7, %c0_8] : memref<2x8x66xf32, #tpu.memory_space<vmem>>, vector<1x8x66xf32>
    %11 = vector.shape_cast %10 : vector<1x8x66xf32> to vector<8x66xf32>
    %12 = vector.extract_strided_slice %11 {offsets = [0, 0], sizes = [8, 64], strides = [1, 1]} : vector<8x66xf32> to vector<8x64xf32>
    %c0_9 = arith.constant 0 : index
    %c64 = arith.constant 64 : index
    %13 = vector.load %arg5[%c0_9, %c64] : memref<25x128xf32, #tpu.memory_space<vmem>>, vector<8x64xf32>
    tpu.vector_store %arg5[%c0_9, %c64], %12 {strides = array<i32>} : memref<25x128xf32, #tpu.memory_space<vmem>>, vector<8x64xf32>,
    %14 = vector.extract_strided_slice %11 {offsets = [0, 1], sizes = [8, 64], strides = [1, 1]} : vector<8x66xf32> to vector<8x64xf32>
    %c8_10 = arith.constant 8 : index
    %c64_11 = arith.constant 64 : index
    %15 = vector.load %arg5[%c8_10, %c64_11] : memref<25x128xf32, #tpu.memory_space<vmem>>, vector<8x64xf32>
    tpu.vector_store %arg5[%c8_10, %c64_11], %14 {strides = array<i32>} : memref<25x128xf32, #tpu.memory_space<vmem>>, vector<8x64xf32>,
    %16 = vector.extract_strided_slice %11 {offsets = [0, 2], sizes = [8, 64], strides = [1, 1]} : vector<8x66xf32> to vector<8x64xf32>
    %c16_12 = arith.constant 16 : index
    %c64_13 = arith.constant 64 : index
    %17 = vector.load %arg5[%c16_12, %c64_13] : memref<25x128xf32, #tpu.memory_space<vmem>>, vector<8x64xf32>
    tpu.vector_store %arg5[%c16_12, %c64_13], %16 {strides = array<i32>} : memref<25x128xf32, #tpu.memory_space<vmem>>, vector<8x64xf32>,
    %c0_14 = arith.constant 0 : index
    %c0_15 = arith.constant 0 : index
    %18 = vector.load %arg2[%c0_14, %c0_15] : memref<8x25xf32, #tpu.memory_space<vmem>>, vector<8x25xf32>
    %c0_16 = arith.constant 0 : index
    %c0_17 = arith.constant 0 : index
    %19 = vector.load %arg5[%c0_16, %c0_17] : memref<25x128xf32, #tpu.memory_space<vmem>>, vector<25x128xf32>
    %cst_18 = arith.constant dense<0.000000e+00> : vector<8x128xf32>
    %20 = tpu.matmul %18, %19, %cst_18 {dimension_numbers = #tpu.dot_dimension_numbers<[1], [0], [0], [1], [0, 0, 1, 1], [], []>} : vector<8x25xf32>, vector<25x128xf32>, vector<8x128xf32> -> vector<8x128xf32>
    %cst_19 = arith.constant dense<0.000000e+00> : vector<128xf32>
    %21 = vector.multi_reduction <add>, %20, %cst_19 [0] : vector<8x128xf32> to vector<128xf32>
    %22 = vector.shape_cast %21 : vector<128xf32> to vector<1x128xf32>
    %23 = arith.mulf %20, %20 : vector<8x128xf32>
    %cst_20 = arith.constant dense<0.000000e+00> : vector<128xf32>
    %24 = vector.multi_reduction <add>, %23, %cst_20 [0] : vector<8x128xf32> to vector<128xf32>
    %25 = vector.shape_cast %24 : vector<128xf32> to vector<1x128xf32>
    %26 = tpu.iota {dimensions = array<i32: 0>} : vector<128x2xi32>
    %27 = tpu.iota {dimensions = array<i32: 1>} : vector<128x2xi32>
    %c64_i32 = arith.constant 64 : i32
    %28 = vector.broadcast %c64_i32 : i32 to vector<128x2xi32>
    %29 = arith.muli %27, %28 : vector<128x2xi32>
    %30 = arith.subi %26, %29 : vector<128x2xi32>
    %c0_i32 = arith.constant 0 : i32
    %31 = vector.broadcast %c0_i32 : i32 to vector<128x2xi32>
    %32 = arith.cmpi sge, %30, %31 : vector<128x2xi32>
    %c64_i32_21 = arith.constant 64 : i32
    %33 = vector.broadcast %c64_i32_21 : i32 to vector<128x2xi32>
    %34 = arith.cmpi slt, %30, %33 : vector<128x2xi32>
    %35 = arith.andi %32, %34 : vector<128x2xi1>
    %cst_22 = arith.constant 1.000000e+00 : f32
    %cst_23 = arith.constant 0.000000e+00 : f32
    %36 = vector.broadcast %cst_22 : f32 to vector<128x2xf32>
    %37 = vector.broadcast %cst_23 : f32 to vector<128x2xf32>
    %38 = arith.select %35, %36, %37 : vector<128x2xi1>, vector<128x2xf32>
    %39 = tpu.iota {dimensions = array<i32: 1>} : vector<2x128xi32>
    %40 = tpu.iota {dimensions = array<i32: 0>} : vector<2x128xi32>
    %c64_i32_24 = arith.constant 64 : i32
    %41 = vector.broadcast %c64_i32_24 : i32 to vector<2x128xi32>
    %42 = arith.muli %40, %41 : vector<2x128xi32>
    %43 = arith.subi %39, %42 : vector<2x128xi32>
    %c0_i32_25 = arith.constant 0 : i32
    %44 = vector.broadcast %c0_i32_25 : i32 to vector<2x128xi32>
    %45 = arith.cmpi sge, %43, %44 : vector<2x128xi32>
    %c64_i32_26 = arith.constant 64 : i32
    %46 = vector.broadcast %c64_i32_26 : i32 to vector<2x128xi32>
    %47 = arith.cmpi slt, %43, %46 : vector<2x128xi32>
    %48 = arith.andi %45, %47 : vector<2x128xi1>
    %cst_27 = arith.constant 1.000000e+00 : f32
    %cst_28 = arith.constant 0.000000e+00 : f32
    %49 = vector.broadcast %cst_27 : f32 to vector<2x128xf32>
    %50 = vector.broadcast %cst_28 : f32 to vector<2x128xf32>
    %51 = arith.select %48, %49, %50 : vector<2x128xi1>, vector<2x128xf32>
    %cst_29 = arith.constant dense<0.000000e+00> : vector<1x2xf32>
    %52 = tpu.matmul %22, %38, %cst_29 {dimension_numbers = #tpu.dot_dimension_numbers<[1], [0], [0], [1], [0, 0, 1, 1], [], []>} : vector<1x128xf32>, vector<128x2xf32>, vector<1x2xf32> -> vector<1x2xf32>
    %cst_30 = arith.constant 0.001953125 : f32
    %53 = vector.broadcast %cst_30 : f32 to vector<1x2xf32>
    %54 = arith.mulf %52, %53 : vector<1x2xf32>
    %cst_31 = arith.constant dense<0.000000e+00> : vector<1x2xf32>
    %55 = tpu.matmul %25, %38, %cst_31 {dimension_numbers = #tpu.dot_dimension_numbers<[1], [0], [0], [1], [0, 0, 1, 1], [], []>} : vector<1x128xf32>, vector<128x2xf32>, vector<1x2xf32> -> vector<1x2xf32>
    %cst_32 = arith.constant 0.001953125 : f32
    %56 = vector.broadcast %cst_32 : f32 to vector<1x2xf32>
    %57 = arith.mulf %55, %56 : vector<1x2xf32>
    %58 = arith.mulf %54, %54 : vector<1x2xf32>
    %59 = arith.subf %57, %58 : vector<1x2xf32>
    %cst_33 = arith.constant 0.000000e+00 : f32
    %60 = vector.broadcast %cst_33 : f32 to vector<1x2xf32>
    %61 = arith.maximumf %59, %60 : vector<1x2xf32>
    %cst_34 = arith.constant 9.99999993E-9 : f32
    %62 = vector.broadcast %cst_34 : f32 to vector<1x2xf32>
    %63 = arith.addf %61, %62 : vector<1x2xf32>
    %64 = math.rsqrt %63 : vector<1x2xf32>
    %c0_35 = arith.constant 0 : index
    %c0_36 = arith.constant 0 : index
    %65 = vector.load %arg3[%c0_35, %c0_36] : memref<8x3xf32, #tpu.memory_space<vmem>>, vector<8x3xf32>
    %66 = vector.extract_strided_slice %65 {offsets = [0, 0], sizes = [8, 1], strides = [1, 1]} : vector<8x3xf32> to vector<8x1xf32>
    %67 = vector.extract_strided_slice %65 {offsets = [0, 1], sizes = [8, 1], strides = [1, 1]} : vector<8x3xf32> to vector<8x1xf32>
    %68 = vector.extract_strided_slice %65 {offsets = [0, 2], sizes = [8, 1], strides = [1, 1]} : vector<8x3xf32> to vector<8x1xf32>
    %69 = vector.broadcast %66 : vector<8x1xf32> to vector<8x2xf32>
    %70 = vector.broadcast %64 : vector<1x2xf32> to vector<8x2xf32>
    %71 = arith.mulf %69, %70 : vector<8x2xf32>
    %72 = vector.broadcast %54 : vector<1x2xf32> to vector<8x2xf32>
    %73 = arith.mulf %72, %71 : vector<8x2xf32>
    %74 = vector.broadcast %67 : vector<8x1xf32> to vector<8x2xf32>
    %75 = arith.subf %74, %73 : vector<8x2xf32>
    %cst_37 = arith.constant dense<0.000000e+00> : vector<8x128xf32>
    %76 = tpu.matmul %71, %51, %cst_37 {dimension_numbers = #tpu.dot_dimension_numbers<[1], [0], [0], [1], [0, 0, 1, 1], [], []>} : vector<8x2xf32>, vector<2x128xf32>, vector<8x128xf32> -> vector<8x128xf32>
    %cst_38 = arith.constant dense<0.000000e+00> : vector<8x128xf32>
    %77 = tpu.matmul %75, %51, %cst_38 {dimension_numbers = #tpu.dot_dimension_numbers<[1], [0], [0], [1], [0, 0, 1, 1], [], []>} : vector<8x2xf32>, vector<2x128xf32>, vector<8x128xf32> -> vector<8x128xf32>
    %78 = arith.mulf %20, %76 : vector<8x128xf32>
    %79 = arith.addf %78, %77 : vector<8x128xf32>
    %cst_39 = arith.constant 0.000000e+00 : f32
    %80 = vector.broadcast %cst_39 : f32 to vector<8x128xf32>
    %81 = arith.cmpf oge, %79, %80 : vector<8x128xf32>
    %82 = vector.broadcast %68 : vector<8x1xf32> to vector<8x128xf32>
    %83 = arith.mulf %82, %79 : vector<8x128xf32>
    %84 = arith.select %81, %79, %83 : vector<8x128xi1>, vector<8x128xf32>
    %c0_40 = arith.constant 0 : index
    %c0_41 = arith.constant 0 : index
    %85 = vector.load %arg4[%c0_40, %c0_41] : memref<8x128xf32, #tpu.memory_space<vmem>>, vector<8x128xf32>
    tpu.vector_store %arg4[%c0_40, %c0_41], %84 {strides = array<i32>} : memref<8x128xf32, #tpu.memory_space<vmem>>, vector<8x128xf32>,
    return
  }
  func.func @transform_0(%arg0: i32) -> (i32, i32, i32) {
    %c0_i32 = arith.constant 0 : i32
    %c0_i32_0 = arith.constant 0 : i32
    %c0_i32_1 = arith.constant 0 : i32
    return %arg0, %c0_i32, %c0_i32_0 : i32, i32, i32
  }
  func.func @transform_1(%arg0: i32) -> (i32, i32) {
    %c0_i32 = arith.constant 0 : i32
    %c0_i32_0 = arith.constant 0 : i32
    %c0_i32_1 = arith.constant 0 : i32
    return %c0_i32, %c0_i32_0 : i32, i32
  }
  func.func @transform_2(%arg0: i32) -> (i32, i32) {
    %c0_i32 = arith.constant 0 : i32
    %c0_i32_0 = arith.constant 0 : i32
    %c0_i32_1 = arith.constant 0 : i32
    return %c0_i32, %c0_i32_0 : i32, i32
  }
  func.func @transform_3(%arg0: i32) -> (i32, i32) {
    %c0_i32 = arith.constant 0 : i32
    %c0_i32_0 = arith.constant 0 : i32
    return %c0_i32, %arg0 : i32, i32
  }
}

</mosaic_0001>

<llo_original>
// kernel: tpu_custom_call.1
$region0: #{tpu_custom_call.1}
  #allocation0 [shape = 'u32[]', space=smem, size = 0x4, offset = 0x4, fixed_abs, tag = 'smem constant byte address 0x4 - core index']
  #allocation1 [shape = 'u32[72,128]{1,0:T(1,128)}', space=vmem, size = 0x9000, scoped, tag = 'internal scratch']
  #allocation2 [shape = 'f32[25,128]{1,0:T(8,128)}', space=vmem, size = 0x4000, scoped, tag = 'scratch operand']
  %s0 = inlined_call_operand.hbm [shape: f32[4,8,66], index: 0, kind: input, shape index: {}]
  %s1 = inlined_call_operand.vmem [shape: f32[8,25], index: 1, kind: input, shape index: {}]
  %s2 = inlined_call_operand.vmem [shape: f32[8,3], index: 2, kind: input, shape index: {}]
  %s3 = inlined_call_operand.hbm [shape: f32[8,256], index: 3, kind: output, shape index: {}]
  %s4 = sld [smem:[#allocation0]]
  $region49: #{tpu_custom_call.1} parent=0
    _
  %s6 = ssub.s32 1, %s4
  %s7 = scalar_select 0, %s6, %s4
  $region1: #{tpu_custom_call.1} parent=0
    #allocation3 [shape = 'u8[16384]{0}', space=vmem, size = 0x4000, scoped, tag = 'input window, operand 0']
    #allocation4 [shape = 's32[2]{0}', space=sflag, size = 0x8, scoped, tag = 'scoped memory for tpu_custom_call.1']
    #allocation5 [shape = 's32[2]{0}', space=sflag, size = 0x8, scoped, tag = 'scoped memory for tpu_custom_call.1']
    #allocation6 [shape = 'u8[8192]{0}', space=vmem, size = 0x2000, scoped, tag = 'output window, operand 0']
    %8 = vsyncpa [#allocation4], 0
    %s9 = scalar_lea.sflag [#allocation4], 1
    %10 = vsyncpa %s9, 0
    %11 = vsyncpa [#allocation5], 0
    %s12 = scalar_lea.sflag [#allocation5], 1
    %13 = vsyncpa %s12, 0
    loop: start=0, step=1, limit=4
    $region2: #{tpu_custom_call.1} parent=1 // loop_pre_header
      _
    $region3: #{tpu_custom_call.1} parent=1 // loop_header
      %s15 = sphi 0, %s19
      %p16 = scmp.ge.s32.totalorder %s15, 4
      %s25 = sphi 0, %s27
      %s28 = sphi 0, %s25
      %s29 = sphi 0, %s28
      %s45 = sphi 0, %s29
      %s49 = sphi 0, %s49
      %s51 = sphi 0, %s49
      %s52 = sphi 0, %s51
      %s66 = sphi 0, %s52
      %s70 = sphi 0, %s70
      %s72 = sphi 0, %s70
      %s73 = sphi 0, %s72
      %s87 = sphi 0, %s73
      %s93 = sphi 0, %s95
      %s96 = sphi 0, %s93
      %s97 = sphi 0, %s96
      %s113 = sphi 0, %s97
    $region4: #{tpu_custom_call.1} parent=1 // loop_header_branch
      %18 = sbr.rel (%p16) target = $region8
    $region5: #{tpu_custom_call.1} parent=1 // loop_body
      %s20 = ssub.s32 %s15, 1
      %s21 = ssub.s32 %s15, 2
      %s22 = sadd.s32 %s15, 1
      %s23 = ssub.s32 %s15, %s22
      %p24 = scmp.eq.s32.totalorder %s23, 0
      %s26 = sadd.s32 %s25, 1
      %s27 = scalar_select %p24, %s25, %s26
      %p30 = pneg %p24
      %p31 = scmp.eq.s32.totalorder %s15, 1
      %p32 = por %p30, %p31
      %p33 = scmp.ne.s32.totalorder %s25, %s28
      %p34 = scmp.eq.s32.totalorder %s15, 0
      %p35 = por %p33, %p34
      %p36 = scmp.ne.s32.totalorder %s25, %s28
      %p37 = scmp.eq.s32.totalorder %s20, 1
      %p38 = por %p36, %p37
      %p39 = scmp.ne.s32.totalorder %s28, %s29
      %p40 = scmp.eq.s32.totalorder %s20, 0
      %p41 = por %p39, %p40
      %p42 = scmp.ne.s32.totalorder %s28, %s29
      %p43 = scmp.eq.s32.totalorder %s21, 1
      %p44 = por %p42, %p43
      %p46 = scmp.ne.s32.totalorder %s29, %s45
      %p47 = scmp.eq.s32.totalorder %s21, 0
      %p48 = por %p46, %p47
      %s50 = sadd.s32 %s49, 1
      %p53 = scmp.eq.s32.totalorder %s15, 1
      %p54 = scmp.ne.s32.totalorder %s49, %s51
      %p55 = scmp.eq.s32.totalorder %s15, 0
      %p56 = por %p54, %p55
      %p57 = scmp.ne.s32.totalorder %s49, %s51
      %p58 = scmp.eq.s32.totalorder %s20, 1
      %p59 = por %p57, %p58
      %p60 = scmp.ne.s32.totalorder %s51, %s52
      %p61 = scmp.eq.s32.totalorder %s20, 0
      %p62 = por %p60, %p61
      %p63 = scmp.ne.s32.totalorder %s51, %s52
      %p64 = scmp.eq.s32.totalorder %s21, 1
      %p65 = por %p63, %p64
      %p67 = scmp.ne.s32.totalorder %s52, %s66
      %p68 = scmp.eq.s32.totalorder %s21, 0
      %p69 = por %p67, %p68
      %s71 = sadd.s32 %s70, 1
      %p74 = scmp.eq.s32.totalorder %s15, 1
      %p75 = scmp.ne.s32.totalorder %s70, %s72
      %p76 = scmp.eq.s32.totalorder %s15, 0
      %p77 = por %p75, %p76
      %p78 = scmp.ne.s32.totalorder %s70, %s72
      %p79 = scmp.eq.s32.totalorder %s20, 1
      %p80 = por %p78, %p79
      %p81 = scmp.ne.s32.totalorder %s72, %s73
      %p82 = scmp.eq.s32.totalorder %s20, 0
      %p83 = por %p81, %p82
      %p84 = scmp.ne.s32.totalorder %s72, %s73
      %p85 = scmp.eq.s32.totalorder %s21, 1
      %p86 = por %p84, %p85
      %p88 = scmp.ne.s32.totalorder %s73, %s87
      %p89 = scmp.eq.s32.totalorder %s21, 0
      %p90 = por %p88, %p89
      %s91 = ssub.s32 %s15, %s22
      %p92 = scmp.eq.s32.totalorder %s91, 0
      %s94 = sadd.s32 %s93, 1
      %s95 = scalar_select %p92, %s93, %s94
      %p98 = pneg %p92
      %p99 = scmp.eq.s32.totalorder %s15, 1
      %p100 = por %p98, %p99
      %p101 = scmp.ne.s32.totalorder %s93, %s96
      %p102 = scmp.eq.s32.totalorder %s15, 0
      %p103 = por %p101, %p102
      %p104 = scmp.ne.s32.totalorder %s93, %s96
      %p105 = scmp.eq.s32.totalorder %s20, 1
      %p106 = por %p104, %p105
      %p107 = scmp.ne.s32.totalorder %s96, %s97
      %p108 = scmp.eq.s32.totalorder %s20, 0
      %p109 = por %p107, %p108
      %p110 = scmp.ne.s32.totalorder %s96, %s97
      %p111 = scmp.eq.s32.totalorder %s21, 1
      %p112 = por %p110, %p111
      %p114 = scmp.ne.s32.totalorder %s97, %s113
      %p115 = scmp.eq.s32.totalorder %s21, 0
      %p116 = por %p114, %p115
      %p117 = scmp.le.s32.totalorder 1, %s15
      %p118 = scmp.lt.s32.totalorder %s15, 3
      %p119 = pnand %p117, %p118
      %p120 = pneg %p119
      // Predicated region
      $region9: #{tpu_custom_call.1} parent=5 // pred_check
        _
      $region10: #{tpu_custom_call.1} parent=5 // pred_check_branch
        %122 = sbr.rel (%p119) target = $region12
      $region11: #{tpu_custom_call.1} parent=5 // pred_region
        %s123 = ssub.s32 %s15, 1
        // Predicated region
        $region13: #{tpu_custom_call.1} parent=11 // pred_check
          %p124 = pneg %p62
        $region14: #{tpu_custom_call.1} parent=11 // pred_check_branch
          %126 = sbr.rel (%p124) target = $region16
        $region15: #{tpu_custom_call.1} parent=11 // pred_region
          _
        $region16: #{tpu_custom_call.1} parent=11 // pred_fallthru
          _
        // Predicated region
        $region17: #{tpu_custom_call.1} parent=11 // pred_check
          %p127 = pneg %p83
        $region18: #{tpu_custom_call.1} parent=11 // pred_check_branch
          %129 = sbr.rel (%p127) target = $region20
        $region19: #{tpu_custom_call.1} parent=11 // pred_region
          _
        $region20: #{tpu_custom_call.1} parent=11 // pred_fallthru
          _
      $region12: #{tpu_custom_call.1} parent=5 // pred_fallthru
        _
      %p130 = scmp.lt.s32.totalorder %s15, 2
      // Predicated region
      $region21: #{tpu_custom_call.1} parent=5 // pred_check
        %p131 = pneg %p130
      $region22: #{tpu_custom_call.1} parent=5 // pred_check_branch
        %133 = sbr.rel (%p131) target = $region24
      $region23: #{tpu_custom_call.1} parent=5 // pred_region
        // Predicated region
        $region25: #{tpu_custom_call.1} parent=23 // pred_check
          %p134 = pneg %p35
        $region26: #{tpu_custom_call.1} parent=23 // pred_check_branch
          %136 = sbr.rel (%p134) target = $region28
        $region27: #{tpu_custom_call.1} parent=23 // pred_region
          %s137 = sand.u32 %s25, 1
          %s138 = scalar_lea.sflag [#allocation4], %s137
          %s139 = sand.u32 %s25, 1
          %s140 = smul.addr %s139, 16
          %s141 = scalar_lea.vmem [#allocation3], %s140
          %s142 = smul.u32 2, %s15
          %144 = vsyncadd %s138, 0
          %s145 = smul.addr %s142, 8
          %s146 = scalar_lea.hbm %s0, %s145
          %s147 = sshll.u32 %s146, 4
          %s148 = int_to_ptr.hbm [resolvable:$true] %s147
          %s149 = sshll.u32 %s141, 4
          %s150 = int_to_ptr.vmem [resolvable:$true] %s149
          %155 = dma.hbm_to_vmem [thread:$0]  %s148, 256, %s150, %s138, 128, 128, 8
        $region28: #{tpu_custom_call.1} parent=23 // pred_fallthru
          _
      $region24: #{tpu_custom_call.1} parent=5 // pred_fallthru
        _
      %p156 = scmp.le.s32.totalorder 1, %s15
      %p157 = scmp.lt.s32.totalorder %s15, 3
      %p158 = pnand %p156, %p157
      %p159 = pneg %p158
      // Predicated region
      $region29: #{tpu_custom_call.1} parent=5 // pred_check
        _
      $region30: #{tpu_custom_call.1} parent=5 // pred_check_branch
        %161 = sbr.rel (%p158) target = $region32
      $region31: #{tpu_custom_call.1} parent=5 // pred_region
        %s162 = ssub.s32 %s15, 1
        %s163 = sand.u32 %s28, 1
        %s164 = scalar_lea.sflag [#allocation4], %s163
        %s165 = sand.u32 %s28, 1
        %s166 = smul.addr %s165, 16
        %s167 = scalar_lea.vmem [#allocation3], %s166
        // Predicated region
        $region33: #{tpu_custom_call.1} parent=31 // pred_check
          %p168 = pneg %p41
        $region34: #{tpu_custom_call.1} parent=31 // pred_check_branch
          %170 = sbr.rel (%p168) target = $region36
        $region35: #{tpu_custom_call.1} parent=31 // pred_region
          %172 = dma.done %s164, 256
        $region36: #{tpu_custom_call.1} parent=31 // pred_fallthru
          _
        %s173 = sand.u32 %s28, 1
        %s174 = scalar_lea.sflag [#allocation4], %s173
        %s175 = sand.u32 %s28, 1
        %s176 = smul.addr %s175, 16
        %s177 = scalar_lea.vmem [#allocation3], %s176
        %p178 = pneg %p41
        %p179 = pneg %p38
        %p180 = pneg %p62
        %p181 = pneg %p59
        %p182 = pneg %p83
        %p183 = pneg %p80
        %p184 = pneg %p109
        %p185 = pneg %p106
        %s186 = sand.u32 %s96, 1
        %s187 = scalar_lea.sflag [#allocation5], %s186
        %s188 = sand.u32 %s96, 1
        %s189 = smul.addr %s188, 8
        %s190 = scalar_lea.vmem [#allocation6], %s189
        %s191 = smul.u32 2, %s20
        %192 = vst [vmem:[#allocation2 + $0x18] sm:$0x1] 1.0
        %v193 = vld [vmem:[%s167] sm:$0xff]
        %vm194 = vcmask 523264
        %195 = vst.msk [vmem:[#allocation2] sm:$0xff] %vm194, %v193
        %197 = vrot.lane.b32.xlu0 %v193, 127
        %v198 = vpop.permute.xlu0 %197
        %200 = vst.msk [vmem:[#allocation2 + $0x8] sm:$0xff] %vm194, %v198
        %201 = vrot.lane.b32.xlu0 %v193, 126
        %v202 = vpop.permute.xlu0 %201
        %204 = vst.msk [vmem:[#allocation2 + $0x10] sm:$0xff] %vm194, %v202
        %s205 = scalar_lea.vmem %s167, 8 [#allocation3]
        %v206 = vld [vmem:[%s205] sm:$0xff]
        %208 = vrot.lane.b32.xlu0 %v206, 64
        %v209 = vpop.permute.xlu0 %208
        %vm211 = vcmask 1048064
        %212 = vst.msk [vmem:[#allocation2] sm:$0xff] %vm211, %v209
        %213 = vrot.lane.b32.xlu0 %v206, 63
        %v214 = vpop.permute.xlu0 %213
        %216 = vst.msk [vmem:[#allocation2 + $0x8] sm:$0xff] %vm211, %v214
        %217 = vrot.lane.b32.xlu0 %v206, 62
        %v218 = vpop.permute.xlu0 %217
        %220 = vst.msk [vmem:[#allocation2 + $0x10] sm:$0xff] %vm211, %v218
        %v221 = vld [vmem:[%s1] sm:$0xff]
        %v222 = vld [vmem:[#allocation2] sm:$0xff]
        %v223 = vld [vmem:[#allocation2 + $0x8] sm:$0xff]
        %v224 = vld [vmem:[#allocation2 + $0x10] sm:$0xff]
        %v225 = vld [vmem:[#allocation2 + $0x18] sm:$0x1]
        %vm226 = vcmask 203776
        %v228 = vsel %vm226, %v221, 0
        %vm230 = vcmask 1040384
        %v232 = vsel %vm230, %v225, 0
        %234 = vmatpush.msra.mxu0 0.0
        %235 = vmatpush.msra.mxu0 0.0
        %236 = vmatpush.msra.mxu0 0.0
        %237 = vmatpush.msra.mxu0 0.0
        %238 = vmatpush.msra.mxu0 0.0
        %239 = vmatpush.msra.mxu0 0.0
        %240 = vmatpush.msra.mxu0 0.0
        %241 = vmatpush.msra.mxu0 0.0
        %242 = vmatpush.msra.mxu0 0.0
        %243 = vmatpush.msra.mxu0 0.0
        %244 = vmatpush.msra.mxu0 0.0
        %245 = vmatpush.msra.mxu0 0.0
        %246 = vmatpush.msra.mxu0 %v232
        %247 = vmatpush.msra.mxu0 %v224
        %248 = vmatpush.msra.mxu0 %v223
        %249 = vmatpush.msra.mxu0 %v222
        %250 = vmatmul.f32.gmra.mxu0 %v228
        %v251 = vpop.f32.mrf.mxu0
        %v252 = vadd.f32 0.0, %v251
        %253 = vdwg.mxu0
        %v254 = vrot.slane %v252, 4
        %v255 = vadd.f32 %v252, %v254
        %v256 = vrot.slane %v255, 2
        %v257 = vadd.f32 %v255, %v256
        %v258 = vrot.slane %v257, 1
        %v259 = vadd.f32 %v257, %v258
        %v260 = vmul.f32 %v252, %v252
        %v261 = vrot.slane %v260, 4
        %v262 = vadd.f32 %v260, %v261
        %v263 = vrot.slane %v262, 2
        %v264 = vadd.f32 %v262, %v263
        %v265 = vrot.slane %v264, 1
        %v266 = vadd.f32 %v264, %v265
        %v267 = vlaneseq
        %v268 = vshrl.u32 %v267, 7
        %v269 = vadd.s32 %v268, 8
        %v270 = vadd.s32 %v268, 16
        %v271 = vadd.s32 %v268, 24
        %v272 = vadd.s32 %v268, 32
        %v273 = vadd.s32 %v268, 40
        %v274 = vadd.s32 %v268, 48
        %v275 = vadd.s32 %v268, 56
        %v276 = vadd.s32 %v268, 64
        %v277 = vadd.s32 %v268, 72
        %v278 = vadd.s32 %v268, 80
        %v279 = vadd.s32 %v268, 88
        %v280 = vadd.s32 %v268, 96
        %v281 = vadd.s32 %v268, 104
        %v282 = vadd.s32 %v268, 112
        %v283 = vadd.s32 %v268, 120
        %v284 = vlaneseq
        %v285 = vand.u32 %v284, 127
        %v286 = vmul.u32 %v285, 64
        %v287 = vsub.s32 %v268, %v286
        %v288 = vsub.s32 %v269, %v286
        %v289 = vsub.s32 %v270, %v286
        %v290 = vsub.s32 %v271, %v286
        %v291 = vsub.s32 %v272, %v286
        %v292 = vsub.s32 %v273, %v286
        %v293 = vsub.s32 %v274, %v286
        %v294 = vsub.s32 %v275, %v286
        %v295 = vsub.s32 %v276, %v286
        %v296 = vsub.s32 %v277, %v286
        %v297 = vsub.s32 %v278, %v286
        %v298 = vsub.s32 %v279, %v286
        %v299 = vsub.s32 %v280, %v286
        %v300 = vsub.s32 %v281, %v286
        %v301 = vsub.s32 %v282, %v286
        %v302 = vsub.s32 %v283, %v286
        %vm303 = vcmp.ge.s32.totalorder %v287, 0
        %vm304 = vcmp.ge.s32.totalorder %v288, 0
        %vm305 = vcmp.ge.s32.totalorder %v289, 0
        %vm306 = vcmp.ge.s32.totalorder %v290, 0
        %vm307 = vcmp.ge.s32.totalorder %v291, 0
        %vm308 = vcmp.ge.s32.totalorder %v292, 0
        %vm309 = vcmp.ge.s32.totalorder %v293, 0
        %vm310 = vcmp.ge.s32.totalorder %v294, 0
        %vm311 = vcmp.ge.s32.totalorder %v295, 0
        %vm312 = vcmp.ge.s32.totalorder %v296, 0
        %vm313 = vcmp.ge.s32.totalorder %v297, 0
        %vm314 = vcmp.ge.s32.totalorder %v298, 0
        %vm315 = vcmp.ge.s32.totalorder %v299, 0
        %vm316 = vcmp.ge.s32.totalorder %v300, 0
        %vm317 = vcmp.ge.s32.totalorder %v301, 0
        %vm318 = vcmp.ge.s32.totalorder %v302, 0
        %vm319 = vcmp.lt.s32.totalorder %v287, 64
        %vm320 = vcmp.lt.s32.totalorder %v288, 64
        %vm321 = vcmp.lt.s32.totalorder %v289, 64
        %vm322 = vcmp.lt.s32.totalorder %v290, 64
        %vm323 = vcmp.lt.s32.totalorder %v291, 64
        %vm324 = vcmp.lt.s32.totalorder %v292, 64
        %vm325 = vcmp.lt.s32.totalorder %v293, 64
        %vm326 = vcmp.lt.s32.totalorder %v294, 64
        %vm327 = vcmp.lt.s32.totalorder %v295, 64
        %vm328 = vcmp.lt.s32.totalorder %v296, 64
        %vm329 = vcmp.lt.s32.totalorder %v297, 64
        %vm330 = vcmp.lt.s32.totalorder %v298, 64
        %vm331 = vcmp.lt.s32.totalorder %v299, 64
        %vm332 = vcmp.lt.s32.totalorder %v300, 64
        %vm333 = vcmp.lt.s32.totalorder %v301, 64
        %vm334 = vcmp.lt.s32.totalorder %v302, 64
        %vm335 = vmand %vm303, %vm319
        %vm336 = vmand %vm304, %vm320
        %vm337 = vmand %vm305, %vm321
        %vm338 = vmand %vm306, %vm322
        %vm339 = vmand %vm307, %vm323
        %vm340 = vmand %vm308, %vm324
        %vm341 = vmand %vm309, %vm325
        %vm342 = vmand %vm310, %vm326
        %vm343 = vmand %vm311, %vm327
        %vm344 = vmand %vm312, %vm328
        %vm345 = vmand %vm313, %vm329
        %vm346 = vmand %vm314, %vm330
        %vm347 = vmand %vm315, %vm331
        %vm348 = vmand %vm316, %vm332
        %vm349 = vmand %vm317, %vm333
        %vm350 = vmand %vm318, %vm334
        %v351 = vsel %vm335, 1.0, 0.0
        %v352 = vsel %vm336, 1.0, 0.0
        %v353 = vsel %vm337, 1.0, 0.0
        %v354 = vsel %vm338, 1.0, 0.0
        %v355 = vsel %vm339, 1.0, 0.0
        %v356 = vsel %vm340, 1.0, 0.0
        %v357 = vsel %vm341, 1.0, 0.0
        %v358 = vsel %vm342, 1.0, 0.0
        %v359 = vsel %vm343, 1.0, 0.0
        %v360 = vsel %vm344, 1.0, 0.0
        %v361 = vsel %vm345, 1.0, 0.0
        %v362 = vsel %vm346, 1.0, 0.0
        %v363 = vsel %vm347, 1.0, 0.0
        %v364 = vsel %vm348, 1.0, 0.0
        %v365 = vsel %vm349, 1.0, 0.0
        %v366 = vsel %vm350, 1.0, 0.0
        %v367 = vmul.u32 %v268, 64
        %v368 = vsub.s32 %v285, %v367
        %vm369 = vcmp.ge.s32.totalorder %v368, 0
        %vm370 = vcmp.lt.s32.totalorder %v368, 64
        %vm371 = vmand %vm369, %vm370
        %v372 = vsel %vm371, 1.0, 0.0
        %373 = vmatpush.msra.mxu0 %v366
        %374 = vmatpush.msra.mxu0 %v365
        %375 = vmatpush.msra.mxu0 %v364
        %376 = vmatpush.msra.mxu0 %v363
        %377 = vmatpush.msra.mxu0 %v362
        %378 = vmatpush.msra.mxu0 %v361
        %379 = vmatpush.msra.mxu0 %v360
        %380 = vmatpush.msra.mxu0 %v359
        %381 = vmatpush.msra.mxu0 %v358
        %382 = vmatpush.msra.mxu0 %v357
        %383 = vmatpush.msra.mxu0 %v356
        %384 = vmatpush.msra.mxu0 %v355
        %385 = vmatpush.msra.mxu0 %v354
        %386 = vmatpush.msra.mxu0 %v353
        %387 = vmatpush.msra.mxu0 %v352
        %388 = vmatpush.msra.mxu0 %v351
        %389 = vmatmul.f32.gmra.mxu0 %v259
        %v390 = vpop.f32.mrf.mxu0
        %v391 = vadd.f32 0.0, %v390
        %392 = vdwg.mxu0
        %v393 = vmul.f32 %v391, 0.001953125
        %394 = vmatpush.msra.mxu0 %v366
        %395 = vmatpush.msra.mxu0 %v365
        %396 = vmatpush.msra.mxu0 %v364
        %397 = vmatpush.msra.mxu0 %v363
        %398 = vmatpush.msra.mxu0 %v362
        %399 = vmatpush.msra.mxu0 %v361
        %400 = vmatpush.msra.mxu0 %v360
        %401 = vmatpush.msra.mxu0 %v359
        %402 = vmatpush.msra.mxu0 %v358
        %403 = vmatpush.msra.mxu0 %v357
        %404 = vmatpush.msra.mxu0 %v356
        %405 = vmatpush.msra.mxu0 %v355
        %406 = vmatpush.msra.mxu0 %v354
        %407 = vmatpush.msra.mxu0 %v353
        %408 = vmatpush.msra.mxu0 %v352
        %409 = vmatpush.msra.mxu0 %v351
        %410 = vmatmul.f32.gmra.mxu0 %v266
        %v411 = vpop.f32.mrf.mxu0
        %v412 = vadd.f32 0.0, %v411
        %413 = vdwg.mxu0
        %v414 = vmul.f32 %v412, 0.001953125
        %v415 = vmul.f32 %v393, %v393
        %v416 = vsub.f32 %v414, %v415
        %v417 = vmax.f32 %v416, 0.0
        %v418 = vadd.f32 %v417, 1e-08
        %v419 = vrsqrt.pop %v418
        %v420 = vmul.f32 %v419, %v418
        %v421 = vmul.f32 %v420, %v419
        %v422 = vmul.f32 0.5, %v421
        %v423 = vsub.f32 1.5, %v422
        %v424 = vmul.f32 %v419, %v423
        %vm425 = vweird.f32 %v418
        %vm426 = vweird.f32 %v419
        %vm427 = vmor %vm425, %vm426
        %v428 = vsel %vm427, %v419, %v424
        %v429 = vld [vmem:[%s2] sm:$0xff]
        %431 = vset.pattern.permute.xlu0 0
        %432 = vperm.xlu0 %431, %v429
        %v433 = vpop.permute.xlu0 %432
        %v435 = vperm.slane %v428, 0
        %v436 = vmul.f32 %v433, %v435
        %v437 = vperm.slane %v393, 0
        %v438 = vmul.f32 %v437, %v436
        %439 = vset.pattern.permute.xlu0 1
        %440 = vperm.xlu0 %439, %v429
        %v441 = vpop.permute.xlu0 %440
        %v443 = vsub.f32 %v441, %v438
        %vm444 = vcmask 15360
        %v446 = vsel %vm444, %v436, 0
        %vm448 = vcmask 1041408
        %v450 = vsel %vm448, %v372, 0
        %452 = vmatpush.msra.mxu0 0.0
        %453 = vmatpush.msra.mxu0 0.0
        %454 = vmatpush.msra.mxu0 0.0
        %455 = vmatpush.msra.mxu0 0.0
        %456 = vmatpush.msra.mxu0 0.0
        %457 = vmatpush.msra.mxu0 0.0
        %458 = vmatpush.msra.mxu0 0.0
        %459 = vmatpush.msra.mxu0 0.0
        %460 = vmatpush.msra.mxu0 0.0
        %461 = vmatpush.msra.mxu0 0.0
        %462 = vmatpush.msra.mxu0 0.0
        %463 = vmatpush.msra.mxu0 0.0
        %464 = vmatpush.msra.mxu0 0.0
        %465 = vmatpush.msra.mxu0 0.0
        %466 = vmatpush.msra.mxu0 0.0
        %467 = vmatpush.msra.mxu0 %v450
        %468 = vmatmul.f32.gmra.mxu0 %v446
        %v469 = vpop.f32.mrf.mxu0
        %v470 = vadd.f32 0.0, %v469
        %471 = vdwg.mxu0
        %v473 = vsel %vm444, %v443, 0
        %475 = vmatpush.msra.mxu0 0.0
        %476 = vmatpush.msra.mxu0 0.0
        %477 = vmatpush.msra.mxu0 0.0
        %478 = vmatpush.msra.mxu0 0.0
        %479 = vmatpush.msra.mxu0 0.0
        %480 = vmatpush.msra.mxu0 0.0
        %481 = vmatpush.msra.mxu0 0.0
        %482 = vmatpush.msra.mxu0 0.0
        %483 = vmatpush.msra.mxu0 0.0
        %484 = vmatpush.msra.mxu0 0.0
        %485 = vmatpush.msra.mxu0 0.0
        %486 = vmatpush.msra.mxu0 0.0
        %487 = vmatpush.msra.mxu0 0.0
        %488 = vmatpush.msra.mxu0 0.0
        %489 = vmatpush.msra.mxu0 0.0
        %490 = vmatpush.msra.mxu0 %v450
        %491 = vmatmul.f32.gmra.mxu0 %v473
        %v492 = vpop.f32.mrf.mxu0
        %v493 = vadd.f32 0.0, %v492
        %494 = vdwg.mxu0
        %v495 = vmul.f32 %v252, %v470
        %v496 = vadd.f32 %v495, %v493
        %vm497 = vcmp.ge.f32.partialorder %v496, 0.0
        %498 = vset.pattern.permute.xlu0 2
        %499 = vperm.xlu0 %498, %v429
        %v500 = vpop.permute.xlu0 %499
        %v502 = vmul.f32 %v500, %v496
        %v503 = vsel %vm497, %v496, %v502
        %504 = vst [vmem:[%s190] sm:$0xff] %v503
        %s505 = sand.u32 %s96, 1
        %s506 = scalar_lea.sflag [#allocation5], %s505
        %s507 = sand.u32 %s96, 1
        %s508 = smul.addr %s507, 8
        %s509 = scalar_lea.vmem [#allocation6], %s508
        // Predicated region
        $region37: #{tpu_custom_call.1} parent=31 // pred_check
          %p510 = pneg %p106
        $region38: #{tpu_custom_call.1} parent=31 // pred_check_branch
          %512 = sbr.rel (%p510) target = $region40
        $region39: #{tpu_custom_call.1} parent=31 // pred_region
          %514 = vsyncadd %s506, 0
          %s515 = smul.addr %s20, 8
          %s516 = scalar_lea.hbm %s3, %s515
          %s518 = sshll.u32 %s509, 4
          %s519 = int_to_ptr.vmem [resolvable:$true] %s518
          %s520 = sshll.u32 %s516, 4
          %s521 = int_to_ptr.hbm [resolvable:$true] %s520
          %523 = dma.vmem_to_hbm [thread:$0]  %s519, 128, %s521, %s506
        $region40: #{tpu_custom_call.1} parent=31 // pred_fallthru
          _
      $region32: #{tpu_custom_call.1} parent=5 // pred_fallthru
        _
      %p524 = scmp.le.s32.totalorder 2, %s15
      // Predicated region
      $region41: #{tpu_custom_call.1} parent=5 // pred_check
        %p525 = pneg %p524
      $region42: #{tpu_custom_call.1} parent=5 // pred_check_branch
        %527 = sbr.rel (%p525) target = $region44
      $region43: #{tpu_custom_call.1} parent=5 // pred_region
        %s528 = ssub.s32 %s15, 2
        // Predicated region
        $region45: #{tpu_custom_call.1} parent=43 // pred_check
          %p529 = pneg %p112
        $region46: #{tpu_custom_call.1} parent=43 // pred_check_branch
          %531 = sbr.rel (%p529) target = $region48
        $region47: #{tpu_custom_call.1} parent=43 // pred_region
          %s532 = sand.u32 %s97, 1
          %s533 = scalar_lea.sflag [#allocation5], %s532
          %s534 = sand.u32 %s97, 1
          %s535 = smul.addr %s534, 8
          %s536 = scalar_lea.vmem [#allocation6], %s535
          %538 = dma.done %s533, 128
        $region48: #{tpu_custom_call.1} parent=43 // pred_fallthru
          _
      $region44: #{tpu_custom_call.1} parent=5 // pred_fallthru
        _
    $region6: #{tpu_custom_call.1} parent=1 // loop_footer
      %s19 = sadd.s32 1, %s15
    $region7: #{tpu_custom_call.1} parent=1 // loop_footer_branch
      %14 = sbr.rel target = $region3
    $region8: #{tpu_custom_call.1} parent=1 // loop_exit
      _
    %539 = vsyncpa [#allocation4], 1
    %s540 = scalar_lea.sflag [#allocation4], 1
    %541 = vsyncpa %s540, 1
    %542 = vsyncpa [#allocation5], 1
    %s543 = scalar_lea.sflag [#allocation5], 1
    %544 = vsyncpa %s543, 1

</llo_original>
